<compile_context>
chip_gen: v7x
topology: tpu7x:2x2x1
jax: 0.10.0
libtpu: 0.0.40
codegen_flags: <defaults>
</compile_context>

<pallas_src>
import functools

import jax
import jax.numpy as jnp
from jax.experimental import pallas as pl
from jax.experimental.pallas import tpu as pltpu


def _cdiv(a, b):
    return -(-a // b)


def _round_up(x, m):
    return _cdiv(x, m) * m


def mlp_kernel(xT_ref, w1_ref, b1_ref, w2_ref, b2_ref, wo_ref, bo_ref, o_ref,
               *, activation):
    """One batch tile, batch-on-lanes layout.

      xT_ref : (in, TM)          f32   batch tile, features on sublanes
      w1_ref : (hidden, in)      f32   b1_ref : (hidden, 1) f32
      w2_ref : (hidden, hidden)  bf16  b2_ref : (hidden, 1) f32
      wo_ref : (hidden, 1)       f32   (temp already folded in, sigmoid path)
      bo_ref : (1,)              f32   SMEM scalar (temp already folded in)
      o_ref  : (1, TM)           f32   lane-dense output row
    """
    in_dim = w1_ref.shape[1]
    xT = xT_ref[...]                                    # (in, TM)

    # Layer 1: K = in_dim is tiny -> skip the MXU entirely. in_dim broadcasted
    # VPU FMAs; the VALU slots have slack while the MXU slot is the binding one.
    acc = w1_ref[:, 0:1] * xT[0:1, :]                   # (hidden, TM)
    for k in range(1, in_dim):
        acc = acc + w1_ref[:, k:k + 1] * xT[k:k + 1, :]
    h = jnp.maximum(acc + b1_ref[...], 0.0)

    # Layer 2: (hidden, hidden) @ (hidden, TM) on the MXU, bf16 operands with
    # f32 accumulate (single pass instead of the ~3x f32 decomposition).
    h = jnp.dot(w2_ref[...], h.astype(jnp.bfloat16),
                preferred_element_type=jnp.float32)
    h = jnp.maximum(h + b2_ref[...], 0.0)

    # Output layer (out_features == 1): VPU multiply + cross-sublane (XLU)
    # reduce -> lane-dense (1, TM) row, no pathological 1-wide MXU matmul.
    z = jnp.sum(h * wo_ref[...], axis=0, keepdims=True) + bo_ref[0]

    if activation == "sigmoid":
        o_ref[...] = jax.nn.sigmoid(z)        # temp folded into wo/bo on host
    else:
        o_ref[...] = jnp.clip(z, 0.0, 1.0)    # torch.clamp(x, 0, 1)


def mlp_forward(x, params, *, temp=1.0, activation="sigmoid",
                block_batch=16384):
    """x: (batch, in_features) f32 -> (batch, 1) f32 (matches the PyTorch MLP)."""
    w1, b1, w2, b2, wo, bo = params
    batch, in_dim = x.shape
    hidden = w1.shape[0]

    # Fold temp into the output layer on the host:
    #   sum(h*wo)*t + bo*t == sum(h*(wo*t)) + bo*t
    if activation == "sigmoid" and float(temp) != 1.0:
        wo = wo * jnp.float32(temp)
        bo = bo * jnp.float32(temp)
    w2_bf16 = w2.astype(jnp.bfloat16)               # bf16 MXU operand
    bo_smem = bo.reshape((1,)).astype(jnp.float32)  # scalar -> SMEM

    # Batch rides the 128-wide lane axis (features on sublanes) so every
    # intermediate and the output row are lane-dense.
    # TODO(synk): the producer could emit x already as (in_features, batch) and
    # skip this transpose copy; under jit it is a single copy feeding the kernel.
    xT = x.T                                        # (in, batch), no pad pass

    # Balanced tiles: smallest tile count respecting block_batch, then an even
    # 128-lane-aligned split. Force >= 2 tiles when there is enough work so the
    # "parallel" batch axis can split across v7x's two TensorCores
    # (v5e/v6e have one TC; extra tiles just pipeline).
    n_tiles = _cdiv(batch, block_batch)
    if n_tiles == 1 and batch > 256:
        n_tiles = 2
    tm = min(_round_up(_cdiv(batch, n_tiles), 128), _round_up(batch, 128))
    grid = (_cdiv(batch, tm),)

    # VMEM at TM=16384: x tile 0.5 MiB + out 0.5 MiB (each double-buffered)
    # + ~8 MiB of live (hidden, TM) f32/bf16 intermediates. 32 MiB is safe on
    # v5e/v6e (128 MiB physical) and is the scoped default on v7x (64 MiB/TC).
    # Per-tile DMA is tiny vs. compute, so no extra pipeline depth is requested.
    const = lambda i: (0, 0)   # grid-invariant: fetched once, kept VMEM-resident
    kernel = functools.partial(mlp_kernel, activation=activation)

    out = pl.pallas_call(
        kernel,
        out_shape=jax.ShapeDtypeStruct((1, batch), jnp.float32),
        grid=grid,
        in_specs=[
            pl.BlockSpec((in_dim, tm), lambda i: (0, i)),   # streamed batch tile
            pl.BlockSpec((hidden, in_dim), const),          # w1
            pl.BlockSpec((hidden, 1), const),               # b1
            pl.BlockSpec((hidden, hidden), const),          # w2 (bf16)
            pl.BlockSpec((hidden, 1), const),               # b2
            pl.BlockSpec((hidden, 1), const),               # wo
            pl.BlockSpec(memory_space=pltpu.MemorySpace.SMEM),  # bo scalar
        ],
        out_specs=pl.BlockSpec((1, tm), lambda i: (0, i)),
        compiler_params=pltpu.CompilerParams(
            dimension_semantics=("parallel",),   # batch tiles split across TCs
            vmem_limit_bytes=32 * 1024 * 1024),
    )(xT, w1, b1, w2_bf16, b2, wo, bo_smem)

    return out[0, :batch].reshape(batch, 1)


def init_linear_params(key, in_features, out_features):
    """nn.Linear-style init U(-1/sqrt(in), 1/sqrt(in)); weight in (out, in)
    PyTorch layout (what the batch-on-lanes kernel wants), bias as (out, 1)."""
    kw, kb = jax.random.split(key)
    bound = 1.0 / jnp.sqrt(jnp.float32(in_features))
    w = jax.random.uniform(kw, (out_features, in_features), jnp.float32, -bound, bound)
    b = jax.random.uniform(kb, (out_features, 1), jnp.float32, -bound, bound)
    return w, b


def mlp_reference(x, params, *, temp=1.0, activation="sigmoid"):
    w1, b1, w2, b2, wo, bo = params
    h = jnp.maximum(x @ w1.T + b1.T, 0.0)
    h = jnp.maximum(h @ w2.T + b2.T, 0.0)
    z = h @ wo + bo.T            # wo stored as (hidden, 1), bo as (1, 1)
    if activation == "sigmoid":
        return jax.nn.sigmoid(z * temp)
    return jnp.clip(z, 0.0, 1.0)


if __name__ == "__main__":
    # MLP(hidden_size=32, num_layers=2, activation_layer='sigmoid', input_dim=4),
    # batch of 8 — small shapes consistent with the module.
    batch, input_dim, hidden_size = 8, 4, 32

    key = jax.random.PRNGKey(0)
    k_x, k1, k2, k3 = jax.random.split(key, 4)

    x = jax.random.normal(k_x, (batch, input_dim), jnp.float32)

    w1, b1 = init_linear_params(k1, input_dim, hidden_size)    # first_hidden_layer
    w2, b2 = init_linear_params(k2, hidden_size, hidden_size)  # rest_hidden_layers[0]
    wo_r, bo = init_linear_params(k3, hidden_size, 1)          # output_layer
    params = (w1, b1, w2, b2, wo_r.T, bo)                      # wo stored as (hidden, 1)

    fwd = jax.jit(mlp_forward,
                  static_argnames=("temp", "activation", "block_batch"))

    # Layer 2 uses bf16 MXU operands -> compare against the f32 reference at a
    # correspondingly relaxed tolerance.
    tol = dict(atol=2e-2, rtol=2e-2)

    out = jax.block_until_ready(fwd(x, params, temp=1.0, activation="sigmoid"))
    ref = mlp_reference(x, params, temp=1.0, activation="sigmoid")
    assert out.shape == (batch, 1)
    assert jnp.allclose(out, ref, **tol), "mismatch vs JAX reference (sigmoid)"

    # clamp(x, 0, 1) output branch.
    outc = jax.block_until_ready(fwd(x, params, temp=1.0, activation="clamp"))
    refc = mlp_reference(x, params, temp=1.0, activation="clamp")
    assert jnp.allclose(outc, refc, **tol), "mismatch vs JAX reference (clamp)"

    # Multi-tile pipelined grid path: 3 tiles of 128 lanes covering batch=300
    # (ragged last tile, masked store) plus a non-unit temp folded on the host.
    xb = jax.random.normal(k_x, (300, input_dim), jnp.float32)
    outb = jax.block_until_ready(
        fwd(xb, params, temp=0.5, activation="sigmoid", block_batch=128))
    refb = mlp_reference(xb, params, temp=0.5, activation="sigmoid")
    assert outb.shape == (300, 1)
    assert jnp.allclose(outb, refb, **tol), "mismatch (tiled/ragged path)"

    print("KERNEL_OK")
</pallas_src>

<mosaic_0001>
module attributes {stable_mosaic.version = 11 : i64} {
  func.func @mlp_kernel(%arg0: i32, %arg1: memref<4x128xf32, #tpu.memory_space<vmem>>, %arg2: memref<32x4xf32, #tpu.memory_space<vmem>>, %arg3: memref<32x1xf32, #tpu.memory_space<vmem>>, %arg4: memref<32x32xbf16, #tpu.memory_space<vmem>>, %arg5: memref<32x1xf32, #tpu.memory_space<vmem>>, %arg6: memref<32x1xf32, #tpu.memory_space<vmem>>, %arg7: memref<1xf32, #tpu.memory_space<smem>>, %arg8: memref<1x128xf32, #tpu.memory_space<vmem>>) attributes {dimension_semantics = [#tpu.dimension_semantics<parallel>], iteration_bounds = array<i64: 1>, scalar_prefetch = 0 : i64, scratch_operands = 0 : i64, tpu.core_type = #tpu.core_type<tc>, window_params = [{transform_indices = @transform_0, window_bounds = array<i64: 4, 128>}, {pipeline_mode = #tpu.pipeline_mode<synchronous>, transform_indices = @transform_1, window_bounds = array<i64: 32, 4>}, {pipeline_mode = #tpu.pipeline_mode<synchronous>, transform_indices = @transform_2, window_bounds = array<i64: 32, 1>}, {pipeline_mode = #tpu.pipeline_mode<synchronous>, transform_indices = @transform_3, window_bounds = array<i64: 32, 32>}, {pipeline_mode = #tpu.pipeline_mode<synchronous>, transform_indices = @transform_4, window_bounds = array<i64: 32, 1>}, {pipeline_mode = #tpu.pipeline_mode<synchronous>, transform_indices = @transform_5, window_bounds = array<i64: 32, 1>}, {transform_indices = @transform_6, window_bounds = array<i64: 1>}, {transform_indices = @transform_7, window_bounds = array<i64: 1, 128>}]} {
    %c0 = arith.constant 0 : index
    %c0_0 = arith.constant 0 : index
    %0 = vector.load %arg1[%c0, %c0_0] : memref<4x128xf32, #tpu.memory_space<vmem>>, vector<4x128xf32>
    %c0_1 = arith.constant 0 : index
    %c0_2 = arith.constant 0 : index
    %1 = vector.load %arg2[%c0_1, %c0_2] : memref<32x4xf32, #tpu.memory_space<vmem>>, vector<32x1xf32>
    %2 = vector.extract_strided_slice %0 {offsets = [0, 0], sizes = [1, 128], strides = [1, 1]} : vector<4x128xf32> to vector<1x128xf32>
    %3 = vector.broadcast %1 : vector<32x1xf32> to vector<32x128xf32>
    %4 = vector.broadcast %2 : vector<1x128xf32> to vector<32x128xf32>
    %5 = arith.mulf %3, %4 : vector<32x128xf32>
    %c0_3 = arith.constant 0 : index
    %c1 = arith.constant 1 : index
    %6 = vector.load %arg2[%c0_3, %c1] : memref<32x4xf32, #tpu.memory_space<vmem>>, vector<32x1xf32>
    %7 = vector.extract_strided_slice %0 {offsets = [1, 0], sizes = [1, 128], strides = [1, 1]} : vector<4x128xf32> to vector<1x128xf32>
    %8 = vector.broadcast %6 : vector<32x1xf32> to vector<32x128xf32>
    %9 = vector.broadcast %7 : vector<1x128xf32> to vector<32x128xf32>
    %10 = arith.mulf %8, %9 : vector<32x128xf32>
    %11 = arith.addf %5, %10 : vector<32x128xf32>
    %c0_4 = arith.constant 0 : index
    %c2 = arith.constant 2 : index
    %12 = vector.load %arg2[%c0_4, %c2] : memref<32x4xf32, #tpu.memory_space<vmem>>, vector<32x1xf32>
    %13 = vector.extract_strided_slice %0 {offsets = [2, 0], sizes = [1, 128], strides = [1, 1]} : vector<4x128xf32> to vector<1x128xf32>
    %14 = vector.broadcast %12 : vector<32x1xf32> to vector<32x128xf32>
    %15 = vector.broadcast %13 : vector<1x128xf32> to vector<32x128xf32>
    %16 = arith.mulf %14, %15 : vector<32x128xf32>
    %17 = arith.addf %11, %16 : vector<32x128xf32>
    %c0_5 = arith.constant 0 : index
    %c3 = arith.constant 3 : index
    %18 = vector.load %arg2[%c0_5, %c3] : memref<32x4xf32, #tpu.memory_space<vmem>>, vector<32x1xf32>
    %19 = vector.extract_strided_slice %0 {offsets = [3, 0], sizes = [1, 128], strides = [1, 1]} : vector<4x128xf32> to vector<1x128xf32>
    %20 = vector.broadcast %18 : vector<32x1xf32> to vector<32x128xf32>
    %21 = vector.broadcast %19 : vector<1x128xf32> to vector<32x128xf32>
    %22 = arith.mulf %20, %21 : vector<32x128xf32>
    %23 = arith.addf %17, %22 : vector<32x128xf32>
    %c0_6 = arith.constant 0 : index
    %c0_7 = arith.constant 0 : index
    %24 = vector.load %arg3[%c0_6, %c0_7] : memref<32x1xf32, #tpu.memory_space<vmem>>, vector<32x1xf32>
    %25 = vector.broadcast %24 : vector<32x1xf32> to vector<32x128xf32>
    %26 = arith.addf %23, %25 : vector<32x128xf32>
    %cst = arith.constant 0.000000e+00 : f32
    %27 = vector.broadcast %cst : f32 to vector<32x128xf32>
    %28 = arith.maximumf %26, %27 : vector<32x128xf32>
    %c0_8 = arith.constant 0 : index
    %c0_9 = arith.constant 0 : index
    %29 = vector.load %arg4[%c0_8, %c0_9] : memref<32x32xbf16, #tpu.memory_space<vmem>>, vector<32x32xbf16>
    %30 = arith.truncf %28 : vector<32x128xf32> to vector<32x128xbf16>
    %cst_10 = arith.constant dense<0.000000e+00> : vector<32x128xf32>
    %31 = tpu.matmul %29, %30, %cst_10 {dimension_numbers = #tpu.dot_dimension_numbers<[1], [0], [0], [1], [0, 0, 1, 1], [], []>} : vector<32x32xbf16>, vector<32x128xbf16>, vector<32x128xf32> -> vector<32x128xf32>
    %c0_11 = arith.constant 0 : index
    %c0_12 = arith.constant 0 : index
    %32 = vector.load %arg5[%c0_11, %c0_12] : memref<32x1xf32, #tpu.memory_space<vmem>>, vector<32x1xf32>
    %33 = vector.broadcast %32 : vector<32x1xf32> to vector<32x128xf32>
    %34 = arith.addf %31, %33 : vector<32x128xf32>
    %cst_13 = arith.constant 0.000000e+00 : f32
    %35 = vector.broadcast %cst_13 : f32 to vector<32x128xf32>
    %36 = arith.maximumf %34, %35 : vector<32x128xf32>
    %c0_14 = arith.constant 0 : index
    %c0_15 = arith.constant 0 : index
    %37 = vector.load %arg6[%c0_14, %c0_15] : memref<32x1xf32, #tpu.memory_space<vmem>>, vector<32x1xf32>
    %38 = vector.broadcast %37 : vector<32x1xf32> to vector<32x128xf32>
    %39 = arith.mulf %36, %38 : vector<32x128xf32>
    %cst_16 = arith.constant dense<0.000000e+00> : vector<128xf32>
    %40 = vector.multi_reduction <add>, %39, %cst_16 [0] : vector<32x128xf32> to vector<128xf32>
    %41 = vector.shape_cast %40 : vector<128xf32> to vector<1x128xf32>
    %c0_17 = arith.constant 0 : index
    %42 = memref.load %arg7[%c0_17] : memref<1xf32, #tpu.memory_space<smem>>
    %43 = vector.broadcast %42 : f32 to vector<1x128xf32>
    %44 = arith.addf %41, %43 : vector<1x128xf32>
    %45 = arith.negf %44 : vector<1x128xf32>
    %46 = math.exp %45 : vector<1x128xf32>
    %cst_18 = arith.constant 1.000000e+00 : f32
    %47 = vector.broadcast %cst_18 : f32 to vector<1x128xf32>
    %48 = arith.addf %47, %46 : vector<1x128xf32>
    %49 = arith.divf %47, %48 : vector<1x128xf32>
    %c0_19 = arith.constant 0 : index
    %c0_20 = arith.constant 0 : index
    %50 = vector.load %arg8[%c0_19, %c0_20] : memref<1x128xf32, #tpu.memory_space<vmem>>, vector<1x128xf32>
    tpu.vector_store %arg8[%c0_19, %c0_20], %49 {strides = array<i32>} : memref<1x128xf32, #tpu.memory_space<vmem>>, vector<1x128xf32>,
    return
  }
  func.func @transform_0(%arg0: i32) -> (i32, i32) {
    %c0_i32 = arith.constant 0 : i32
    %c0_i32_0 = arith.constant 0 : i32
    return %c0_i32, %arg0 : i32, i32
  }
  func.func @transform_1(%arg0: i32) -> (i32, i32) {
    %c0_i32 = arith.constant 0 : i32
    %c0_i32_0 = arith.constant 0 : i32
    %c0_i32_1 = arith.constant 0 : i32
    return %c0_i32, %c0_i32_0 : i32, i32
  }
  func.func @transform_2(%arg0: i32) -> (i32, i32) {
    %c0_i32 = arith.constant 0 : i32
    %c0_i32_0 = arith.constant 0 : i32
    %c0_i32_1 = arith.constant 0 : i32
    return %c0_i32, %c0_i32_0 : i32, i32
  }
  func.func @transform_3(%arg0: i32) -> (i32, i32) {
    %c0_i32 = arith.constant 0 : i32
    %c0_i32_0 = arith.constant 0 : i32
    %c0_i32_1 = arith.constant 0 : i32
    return %c0_i32, %c0_i32_0 : i32, i32
  }
  func.func @transform_4(%arg0: i32) -> (i32, i32) {
    %c0_i32 = arith.constant 0 : i32
    %c0_i32_0 = arith.constant 0 : i32
    %c0_i32_1 = arith.constant 0 : i32
    return %c0_i32, %c0_i32_0 : i32, i32
  }
  func.func @transform_5(%arg0: i32) -> (i32, i32) {
    %c0_i32 = arith.constant 0 : i32
    %c0_i32_0 = arith.constant 0 : i32
    %c0_i32_1 = arith.constant 0 : i32
    return %c0_i32, %c0_i32_0 : i32, i32
  }
  func.func @transform_6(%arg0: i32) -> i32 {
    %c0_i32 = arith.constant 0 : i32
    %c0_i32_0 = arith.constant 0 : i32
    return %c0_i32 : i32
  }
  func.func @transform_7(%arg0: i32) -> (i32, i32) {
    %c0_i32 = arith.constant 0 : i32
    %c0_i32_0 = arith.constant 0 : i32
    return %c0_i32, %arg0 : i32, i32
  }
}

</mosaic_0001>

<llo_original>
// kernel: mlp_forward.1
$region0: #{mlp_forward.1}
  #allocation0 [shape = 'u32[]', space=smem, size = 0x4, offset = 0x4, fixed_abs, tag = 'smem constant byte address 0x4 - core index']
  #allocation1 [shape = 'u32[144,128]{1,0:T(1,128)}', space=vmem, size = 0x12000, scoped, tag = 'internal scratch']
  #allocation2 [shape = 'f32[1]{0:T(128)S(6)}', space=smem, size = 0x200, scoped, tag = 'scoped memory for mlp_forward.1']
  %s0 = inlined_call_operand.vmem [shape: f32[4,8], index: 0, kind: input, shape index: {}]
  %s1 = inlined_call_operand.vmem [shape: f32[32,4], index: 1, kind: input, shape index: {}]
  %s2 = inlined_call_operand.vmem [shape: f32[32,1], index: 2, kind: input, shape index: {}]
  %s3 = inlined_call_operand.vmem [shape: bf16[32,32], index: 3, kind: input, shape index: {}]
  %s4 = inlined_call_operand.vmem [shape: f32[32,1], index: 4, kind: input, shape index: {}]
  %s5 = inlined_call_operand.vmem [shape: f32[32,1], index: 5, kind: input, shape index: {}]
  %s6 = inlined_call_operand.<no memory space> [shape: f32[1], index: 6, kind: input, shape index: {}]
  %s7 = inlined_call_operand.hbm [shape: f32[1,8], index: 7, kind: output, shape index: {}]
  %s8 = sld [smem:[#allocation0]]
  $region38: #{mlp_forward.1} parent=0
    _
  %s10 = ssub.s32 1, %s8
  %s11 = scalar_select 0, %s10, %s8
  %12 = sst [smem:[#allocation2]] %s6
  $region1: #{mlp_forward.1} parent=0
    #allocation3 [shape = 'u8[512]{0}', space=vmem, size = 0x400, scoped, tag = 'output window, operand 0, single buffered']
    #allocation4 [shape = 's32[1]{0}', space=sflag, size = 0x4, scoped, tag = 'scoped memory for mlp_forward.1']
    %13 = vsyncpa [#allocation4], 0
    // Predicated region
    $region2: #{mlp_forward.1} parent=1 // pred_check
      _
    $region3: #{mlp_forward.1} parent=1 // pred_check_branch
      %15 = sbr.rel (0) target = $region5
    $region4: #{mlp_forward.1} parent=1 // pred_region
      _
    $region5: #{mlp_forward.1} parent=1 // pred_fallthru
      _
    // Predicated region
    $region6: #{mlp_forward.1} parent=1 // pred_check
      _
    $region7: #{mlp_forward.1} parent=1 // pred_check_branch
      %17 = sbr.rel (0) target = $region9
    $region8: #{mlp_forward.1} parent=1 // pred_region
      _
    $region9: #{mlp_forward.1} parent=1 // pred_fallthru
      _
    // Predicated region
    $region10: #{mlp_forward.1} parent=1 // pred_check
      _
    $region11: #{mlp_forward.1} parent=1 // pred_check_branch
      %19 = sbr.rel (0) target = $region13
    $region12: #{mlp_forward.1} parent=1 // pred_region
      _
    $region13: #{mlp_forward.1} parent=1 // pred_fallthru
      _
    // Predicated region
    $region14: #{mlp_forward.1} parent=1 // pred_check
      _
    $region15: #{mlp_forward.1} parent=1 // pred_check_branch
      %21 = sbr.rel (0) target = $region17
    $region16: #{mlp_forward.1} parent=1 // pred_region
      _
    $region17: #{mlp_forward.1} parent=1 // pred_fallthru
      _
    // Predicated region
    $region18: #{mlp_forward.1} parent=1 // pred_check
      _
    $region19: #{mlp_forward.1} parent=1 // pred_check_branch
      %23 = sbr.rel (0) target = $region21
    $region20: #{mlp_forward.1} parent=1 // pred_region
      _
    $region21: #{mlp_forward.1} parent=1 // pred_fallthru
      _
    // Predicated region
    $region22: #{mlp_forward.1} parent=1 // pred_check
      _
    $region23: #{mlp_forward.1} parent=1 // pred_check_branch
      %25 = sbr.rel (0) target = $region25
    $region24: #{mlp_forward.1} parent=1 // pred_region
      _
    $region25: #{mlp_forward.1} parent=1 // pred_fallthru
      _
    // Predicated region
    $region26: #{mlp_forward.1} parent=1 // pred_check
      _
    $region27: #{mlp_forward.1} parent=1 // pred_check_branch
      %27 = sbr.rel (0) target = $region29
    $region28: #{mlp_forward.1} parent=1 // pred_region
      _
    $region29: #{mlp_forward.1} parent=1 // pred_fallthru
      _
    %v29 = vld [vmem:[%s0] sm:$0xf]
    %v30 = vld [vmem:[%s1] sm:$0xff]
    %v31 = vld [vmem:[%s1 + $0x8] sm:$0xff]
    %v32 = vld [vmem:[%s1 + $0x10] sm:$0xff]
    %v33 = vld [vmem:[%s1 + $0x18] sm:$0xff]
    %35 = vset.pattern.permute.xlu0 0
    %36 = vperm.xlu0 %35, %v30
    %v37 = vpop.permute.xlu0 %36
    %40 = vset.pattern.permute.xlu0 0
    %41 = vperm.xlu0 %40, %v31
    %v42 = vpop.permute.xlu0 %41
    %45 = vset.pattern.permute.xlu0 0
    %46 = vperm.xlu0 %45, %v32
    %v47 = vpop.permute.xlu0 %46
    %50 = vset.pattern.permute.xlu0 0
    %51 = vperm.xlu0 %50, %v33
    %v52 = vpop.permute.xlu0 %51
    %v54 = vlaneseq
    %v55 = vshrl.u32 %v54, 7
    %v56 = vsub.s32 0, %v55
    %v57 = vrot.slane %v29, %v56
    %v58 = vmul.f32 %v37, %v57
    %v59 = vmul.f32 %v42, %v57
    %v60 = vmul.f32 %v47, %v57
    %v61 = vmul.f32 %v52, %v57
    %62 = vset.pattern.permute.xlu0 1
    %63 = vperm.xlu0 %62, %v30
    %v64 = vpop.permute.xlu0 %63
    %66 = vset.pattern.permute.xlu0 1
    %67 = vperm.xlu0 %66, %v31
    %v68 = vpop.permute.xlu0 %67
    %70 = vset.pattern.permute.xlu0 1
    %71 = vperm.xlu0 %70, %v32
    %v72 = vpop.permute.xlu0 %71
    %74 = vset.pattern.permute.xlu0 1
    %75 = vperm.xlu0 %74, %v33
    %v76 = vpop.permute.xlu0 %75
    %v78 = vlaneseq
    %v79 = vshrl.u32 %v78, 7
    %v80 = vsub.s32 1, %v79
    %v81 = vrot.slane %v29, %v80
    %v82 = vmul.f32 %v64, %v81
    %v83 = vmul.f32 %v68, %v81
    %v84 = vmul.f32 %v72, %v81
    %v85 = vmul.f32 %v76, %v81
    %v86 = vadd.f32 %v58, %v82
    %v87 = vadd.f32 %v59, %v83
    %v88 = vadd.f32 %v60, %v84
    %v89 = vadd.f32 %v61, %v85
    %90 = vset.pattern.permute.xlu0 2
    %91 = vperm.xlu0 %90, %v30
    %v92 = vpop.permute.xlu0 %91
    %94 = vset.pattern.permute.xlu0 2
    %95 = vperm.xlu0 %94, %v31
    %v96 = vpop.permute.xlu0 %95
    %98 = vset.pattern.permute.xlu0 2
    %99 = vperm.xlu0 %98, %v32
    %v100 = vpop.permute.xlu0 %99
    %102 = vset.pattern.permute.xlu0 2
    %103 = vperm.xlu0 %102, %v33
    %v104 = vpop.permute.xlu0 %103
    %v106 = vlaneseq
    %v107 = vshrl.u32 %v106, 7
    %v108 = vsub.s32 2, %v107
    %v109 = vrot.slane %v29, %v108
    %v110 = vmul.f32 %v92, %v109
    %v111 = vmul.f32 %v96, %v109
    %v112 = vmul.f32 %v100, %v109
    %v113 = vmul.f32 %v104, %v109
    %v114 = vadd.f32 %v86, %v110
    %v115 = vadd.f32 %v87, %v111
    %v116 = vadd.f32 %v88, %v112
    %v117 = vadd.f32 %v89, %v113
    %118 = vset.pattern.permute.xlu0 3
    %119 = vperm.xlu0 %118, %v30
    %v120 = vpop.permute.xlu0 %119
    %122 = vset.pattern.permute.xlu0 3
    %123 = vperm.xlu0 %122, %v31
    %v124 = vpop.permute.xlu0 %123
    %126 = vset.pattern.permute.xlu0 3
    %127 = vperm.xlu0 %126, %v32
    %v128 = vpop.permute.xlu0 %127
    %130 = vset.pattern.permute.xlu0 3
    %131 = vperm.xlu0 %130, %v33
    %v132 = vpop.permute.xlu0 %131
    %v134 = vlaneseq
    %v135 = vshrl.u32 %v134, 7
    %v136 = vsub.s32 3, %v135
    %v137 = vrot.slane %v29, %v136
    %v138 = vmul.f32 %v120, %v137
    %v139 = vmul.f32 %v124, %v137
    %v140 = vmul.f32 %v128, %v137
    %v141 = vmul.f32 %v132, %v137
    %v142 = vadd.f32 %v114, %v138
    %v143 = vadd.f32 %v115, %v139
    %v144 = vadd.f32 %v116, %v140
    %v145 = vadd.f32 %v117, %v141
    %v146 = vld [vmem:[%s2] sm:$0xff]
    %v147 = vld [vmem:[%s2 + $0x8] sm:$0xff]
    %v148 = vld [vmem:[%s2 + $0x10] sm:$0xff]
    %v149 = vld [vmem:[%s2 + $0x18] sm:$0xff]
    %151 = vset.pattern.permute.xlu0 0
    %152 = vperm.xlu0 %151, %v146
    %v153 = vpop.permute.xlu0 %152
    %156 = vset.pattern.permute.xlu0 0
    %157 = vperm.xlu0 %156, %v147
    %v158 = vpop.permute.xlu0 %157
    %161 = vset.pattern.permute.xlu0 0
    %162 = vperm.xlu0 %161, %v148
    %v163 = vpop.permute.xlu0 %162
    %166 = vset.pattern.permute.xlu0 0
    %167 = vperm.xlu0 %166, %v149
    %v168 = vpop.permute.xlu0 %167
    %v170 = vadd.f32 %v142, %v153
    %v171 = vadd.f32 %v143, %v158
    %v172 = vadd.f32 %v144, %v163
    %v173 = vadd.f32 %v145, %v168
    %v174 = vmax.f32 %v170, 0.0
    %v175 = vmax.f32 %v171, 0.0
    %v176 = vmax.f32 %v172, 0.0
    %v177 = vmax.f32 %v173, 0.0
    %v178 = vld [vmem:[%s3] sm:$0xf]
    %v179 = vld [vmem:[%s3 + $0x4] sm:$0xf]
    %v180 = vld [vmem:[%s3 + $0x8] sm:$0xf]
    %v181 = vld [vmem:[%s3 + $0xc] sm:$0xf]
    %v182 = vpack.c.bf16 %v175, %v174
    %v183 = vpack.c.bf16 %v177, %v176
    %v184 = vld [vmem:[%s4] sm:$0xff]
    %v185 = vld [vmem:[%s4 + $0x8] sm:$0xff]
    %v186 = vld [vmem:[%s4 + $0x10] sm:$0xff]
    %v187 = vld [vmem:[%s4 + $0x18] sm:$0xff]
    %189 = vset.pattern.permute.xlu0 0
    %190 = vperm.xlu0 %189, %v184
    %v191 = vpop.permute.xlu0 %190
    %194 = vset.pattern.permute.xlu0 0
    %195 = vperm.xlu0 %194, %v185
    %v196 = vpop.permute.xlu0 %195
    %199 = vset.pattern.permute.xlu0 0
    %200 = vperm.xlu0 %199, %v186
    %v201 = vpop.permute.xlu0 %200
    %204 = vset.pattern.permute.xlu0 0
    %205 = vperm.xlu0 %204, %v187
    %v206 = vpop.permute.xlu0 %205
    %v212 = vunpack.c.l.b16 %v178
    %v213 = vunpack.c.l.b16 %v179
    %v214 = vunpack.c.l.b16 %v180
    %v215 = vunpack.c.l.b16 %v181
    %v216 = vpack.c.b16 %v213, %v212
    %v217 = vpack.c.b16 %v215, %v214
    %vm218 = vcmask 261120
    %v220 = vsel %vm218, %v216, 0
    %v223 = vsel %vm218, %v217, 0
    %225 = vmatprep.subr.bf16.mxu0 0
    %226 = vmatpush1.bf16.msra.mxu0 %v182
    %227 = vmatprep.subr.bf16.mxu0 0
    %228 = vmatpush1.bf16.msra.mxu0 %v183
    %229 = vmatprep.subr.bf16.mxu0 0
    %230 = vmatpush1.bf16.msra.mxu0 0
    %231 = vmatprep.subr.bf16.mxu0 0
    %232 = vmatpush1.bf16.msra.mxu0 0
    %233 = vmatprep.subr.bf16.mxu0 0
    %234 = vmatpush1.bf16.msra.mxu0 0
    %235 = vmatprep.subr.bf16.mxu0 0
    %236 = vmatpush1.bf16.msra.mxu0 0
    %237 = vmatprep.subr.bf16.mxu0 0
    %238 = vmatpush1.bf16.msra.mxu0 0
    %239 = vmatprep.subr.bf16.mxu0 0
    %240 = vmatpush1.bf16.msra.mxu0 0
    %241 = vmatprep.subr.bf16.mxu0 0
    %242 = vmatpush1.bf16.msra.mxu0 0
    %243 = vmatprep.subr.bf16.mxu0 0
    %244 = vmatpush1.bf16.msra.mxu0 0
    %245 = vmatprep.subr.bf16.mxu0 0
    %246 = vmatpush1.bf16.msra.mxu0 0
    %247 = vmatprep.subr.bf16.mxu0 0
    %248 = vmatpush1.bf16.msra.mxu0 0
    %249 = vmatprep.subr.bf16.mxu0 0
    %250 = vmatpush1.bf16.msra.mxu0 0
    %251 = vmatprep.subr.bf16.mxu0 0
    %252 = vmatpush1.bf16.msra.mxu0 0
    %253 = vmatprep.subr.bf16.mxu0 0
    %254 = vmatpush1.bf16.msra.mxu0 0
    %255 = vmatprep.subr.bf16.mxu0 0
    %256 = vmatpush1.bf16.msra.mxu0 0
    %257 = vmatprep.mubr.bf16.mxu0 0
    %258 = vmatmul.mubr.bf16.gmra.mrb[0].mxu0 %v220
    %v259 = vpop.f32.mrb[0].mxu0
    %v260 = vadd.f32 %v191, %v259
    %v261 = vpop.f32.mrb[0].mxu0
    %v262 = vpop.f32.mrb[0].mxu0
    %v263 = vadd.f32 %v196, %v262
    %v264 = vpop.f32.mrb[0].mxu0
    %265 = vmatprep.mubr.bf16.mxu0 0
    %266 = vmatmul.mubr.bf16.gmra.mrb[0].mxu0 %v223
    %v267 = vpop.f32.mrb[0].mxu0
    %v268 = vadd.f32 %v201, %v267
    %v269 = vpop.f32.mrb[0].mxu0
    %v270 = vpop.f32.mrb[0].mxu0
    %v271 = vadd.f32 %v206, %v270
    %v272 = vpop.f32.mrb[0].mxu0
    %273 = vdwg.mxu0
    %v274 = vmax.f32 %v260, 0.0
    %v275 = vmax.f32 %v263, 0.0
    %v276 = vmax.f32 %v268, 0.0
    %v277 = vmax.f32 %v271, 0.0
    %v278 = vld [vmem:[%s5] sm:$0xff]
    %v279 = vld [vmem:[%s5 + $0x8] sm:$0xff]
    %v280 = vld [vmem:[%s5 + $0x10] sm:$0xff]
    %v281 = vld [vmem:[%s5 + $0x18] sm:$0xff]
    %283 = vset.pattern.permute.xlu0 0
    %284 = vperm.xlu0 %283, %v278
    %v285 = vpop.permute.xlu0 %284
    %288 = vset.pattern.permute.xlu0 0
    %289 = vperm.xlu0 %288, %v279
    %v290 = vpop.permute.xlu0 %289
    %293 = vset.pattern.permute.xlu0 0
    %294 = vperm.xlu0 %293, %v280
    %v295 = vpop.permute.xlu0 %294
    %298 = vset.pattern.permute.xlu0 0
    %299 = vperm.xlu0 %298, %v281
    %v300 = vpop.permute.xlu0 %299
    %v302 = vmul.f32 %v274, %v285
    %v303 = vmul.f32 %v275, %v290
    %v304 = vmul.f32 %v276, %v295
    %v305 = vmul.f32 %v277, %v300
    %v306 = vadd.f32 %v302, %v303
    %v307 = vadd.f32 %v306, %v304
    %v308 = vadd.f32 %v307, %v305
    %v309 = vrot.slane %v308, 4
    %v310 = vadd.f32 %v308, %v309
    %v311 = vrot.slane %v310, 2
    %v312 = vadd.f32 %v310, %v311
    %v313 = vrot.slane %v312, 1
    %v314 = vadd.f32 %v312, %v313
    %s315 = sld [smem:[#allocation2]]
    %v316 = vstv %s315
    %v317 = vadd.f32 %v314, %v316
    %v318 = vxor.u32 %v317, 2147483648
    %v319 = vmul.f32 %v318, 1.442695
    %v320 = vpow.pop %v319
    %v321 = vadd.f32 %v320, 1.0
    %v322 = vrcp.pop %v321
    %v323 = vmul.f32 1.0, %v322
    %324 = vst [vmem:[#allocation3] sm:$0x1] %v323
    // Predicated region
    $region30: #{mlp_forward.1} parent=1 // pred_check
      _
    $region31: #{mlp_forward.1} parent=1 // pred_check_branch
      %326 = sbr.rel (0) target = $region33
    $region32: #{mlp_forward.1} parent=1 // pred_region
      %s328 = ssub.s32 16, 16
      %329 = vsyncadd [#allocation4], %s328
      %s331 = sshll.u32 [#allocation3], 4
      %s332 = int_to_ptr.vmem [resolvable:$true] %s331
      %334 = dma.vmem_to_hbm [thread:$0]  %s332, 16, %s7, [#allocation4]
    $region33: #{mlp_forward.1} parent=1 // pred_fallthru
      _
    // Predicated region
    $region34: #{mlp_forward.1} parent=1 // pred_check
      _
    $region35: #{mlp_forward.1} parent=1 // pred_check_branch
      %336 = sbr.rel (0) target = $region37
    $region36: #{mlp_forward.1} parent=1 // pred_region
      %337 = dma.done [#allocation4], 16
    $region37: #{mlp_forward.1} parent=1 // pred_fallthru
      _
    %338 = vsyncpa [#allocation4], 1

</llo_original>
